<compile_context>
chip_gen: v7x
topology: tpu7x:2x2x1
jax: 0.10.0
libtpu: 0.0.40
codegen_flags: <defaults>
</compile_context>

<pallas_src>
import jax
import jax.numpy as jnp
from jax.experimental import pallas as pl
from jax.experimental.pallas import tpu as pltpu


def _atom_distances_kernel(cell_sref,   # SMEM (B, 3, 3) f32   (scalar prefetch)
                           pos_t_ref,   # VMEM (1, 3, A)       all atom positions
                           pos_c_ref,   # VMEM (1, TA, 3)      central-atom positions
                           nbh_ref,     # VMEM (1, TA, N)      neighbor indices (int32)
                           off_ref,     # VMEM (1, 3, TA, N)   cell offsets
                           mask_ref,    # VMEM (1, TA, N)      0/1 neighbor mask
                           dist_ref):   # VMEM (1, TA, N)      output distances
    b = pl.program_id(0)

    pos_t = pos_t_ref[0]                      # (3, A)
    pos_c = pos_c_ref[0]                      # (TA, 3)
    nbh = nbh_ref[0]                          # (TA, N) int32
    mask = mask_ref[0]                        # (TA, N)

    A = pos_t.shape[1]
    TA, N = nbh.shape

    # --- lane-dense one-hot gather matrix: onehot[m, p] = (nbh_flat[p] == m) ---
    nbh_flat = nbh.reshape(TA * N)            # flattened (atom, nbh) pair index
    row_ids = jax.lax.broadcasted_iota(jnp.int32, (A, TA * N), 0)
    onehot = (row_ids == nbh_flat[None, :]).astype(jnp.float32)    # (A, TA*N)

    # --- gather all 3 Cartesian components with a single MXU matmul ---
    # (3, A) @ (A, TA*N) -> (3, TA*N); exact: onehot is 0/1, accumulation is f32.
    nbh_pos = jnp.dot(pos_t, onehot, preferred_element_type=jnp.float32)
    nbh_pos = nbh_pos.reshape(3, TA, N)

    # hoist the three lane-dense offset planes (reused by all 3 output dims)
    offs = [off_ref[0, c] for c in range(3)]  # 3 x (TA, N)

    # --- distance vectors + periodic cell shift (9 scalar-vector FMAs) ---
    sq = None
    for d in range(3):
        dv = nbh_pos[d] - pos_c[:, d:d + 1]           # (TA, N) - (TA, 1)
        for c in range(3):
            dv = dv + cell_sref[b, c, d] * offs[c]    # cell scalar from SMEM
        sq = dv * dv if sq is None else sq + dv * dv

    # --- 2-norm over Cartesian axis + mask (multiply; mask is 0/1 float) ---
    dist_ref[0] = jnp.sqrt(sq) * mask


def _round_up(x, m):
    return ((x + m - 1) // m) * m


def _choose_atom_tile(A, N_pad, onehot_budget_bytes=6 * 1024 * 1024):
    """Atom-tile size so the (A, TA*N) one-hot stays within a VMEM budget."""
    a_rows = max(_round_up(A, 8), 8)
    ta = onehot_budget_bytes // (a_rows * N_pad * 4)
    ta = max(8, (ta // 8) * 8)
    ta = min(ta, _round_up(A, 8))
    return int(ta)


def atom_distances(positions, neighbors, cell=None, cell_offsets=None,
                   neighbor_mask=None):
    """Pallas equivalent of AtomDistances(return_directions=False).forward."""
    # TODO(synk): return_directions=True path (normalized direction vectors)
    # not emitted; module default is return_directions=False.
    positions = positions.astype(jnp.float32)
    neighbors = neighbors.astype(jnp.int32)
    B, A, _ = positions.shape
    N = neighbors.shape[2]

    if cell is None:
        # zero cell + zero offsets reproduce the "no periodic cell" branch exactly
        cell = jnp.zeros((B, 3, 3), jnp.float32)
        cell_offsets = jnp.zeros((B, A, N, 3), jnp.float32)
    else:
        cell = cell.astype(jnp.float32)
        cell_offsets = cell_offsets.astype(jnp.float32)

    if neighbor_mask is None:
        mask = jnp.ones((B, A, N), jnp.float32)
    else:
        mask = (neighbor_mask != 0).astype(jnp.float32)  # binary -> mask-by-multiply

    # Lane-dense padding: N -> multiple of 128, A -> multiple of the atom tile.
    N_pad = _round_up(N, 128)
    TA = _choose_atom_tile(A, N_pad)
    A_pad = _round_up(A, TA)
    pad_a, pad_n = A_pad - A, N_pad - N

    pos_p = jnp.pad(positions, ((0, 0), (0, pad_a), (0, 0)))
    nbh_p = jnp.pad(neighbors, ((0, 0), (0, pad_a), (0, pad_n)))       # pad idx 0 (masked)
    off_p = jnp.pad(cell_offsets, ((0, 0), (0, pad_a), (0, pad_n), (0, 0)))
    mask_p = jnp.pad(mask, ((0, 0), (0, pad_a), (0, pad_n)))

    # Cartesian axis moved off the lane dimension.
    pos_t = jnp.transpose(pos_p, (0, 2, 1))        # (B, 3, A_pad)
    off_t = jnp.transpose(off_p, (0, 3, 1, 2))     # (B, 3, A_pad, N_pad)

    grid = (B, A_pad // TA)

    out = pl.pallas_call(
        _atom_distances_kernel,
        out_shape=jax.ShapeDtypeStruct((B, A_pad, N_pad), jnp.float32),
        grid_spec=pltpu.PrefetchScalarGridSpec(
            num_scalar_prefetch=1,                 # cell -> SMEM, read as 9 scalars
            grid=grid,
            in_specs=[
                pl.BlockSpec((1, 3, A_pad), lambda b, i, _: (b, 0, 0)),
                pl.BlockSpec((1, TA, 3), lambda b, i, _: (b, i, 0)),
                pl.BlockSpec((1, TA, N_pad), lambda b, i, _: (b, i, 0)),
                pl.BlockSpec((1, 3, TA, N_pad), lambda b, i, _: (b, 0, i, 0)),
                pl.BlockSpec((1, TA, N_pad), lambda b, i, _: (b, i, 0)),
            ],
            out_specs=pl.BlockSpec((1, TA, N_pad), lambda b, i, _: (b, i, 0)),
        ),
        compiler_params=pltpu.CompilerParams(
            dimension_semantics=("parallel", "parallel"),
            vmem_limit_bytes=32 * 1024 * 1024,
        ),
    )(cell, pos_t, pos_p, nbh_p, off_t, mask_p)

    return out[:, :A, :N]


def _reference(positions, neighbors, cell, cell_offsets, neighbor_mask):
    """Pure-JAX reference mirroring spk.nn.atom_distances."""
    pos_nbh = jnp.take_along_axis(
        positions[:, None, :, :],                       # (B, 1, A, 3)
        neighbors[:, :, :, None].astype(jnp.int32),     # (B, A, N, 1)
        axis=2)                                          # (B, A, N, 3)
    dist_vec = pos_nbh - positions[:, :, None, :]
    if cell is not None:
        B, A, N, D = cell_offsets.shape
        offs = jnp.einsum("bxc,bcd->bxd",
                          cell_offsets.reshape(B, A * N, D), cell)
        dist_vec = dist_vec + offs.reshape(B, A, N, D)
    d = jnp.linalg.norm(dist_vec, axis=3)
    if neighbor_mask is not None:
        d = jnp.where(neighbor_mask != 0, d, 0.0)
    return d


if __name__ == "__main__":
    key = jax.random.PRNGKey(0)
    B, A = 2, 8
    N = A - 1  # each atom sees every other atom

    k_pos, k_cell, k_off, k_mask = jax.random.split(key, 4)

    positions = jax.random.normal(k_pos, (B, A, 3), dtype=jnp.float32) * 2.0

    # neighbor indices: for atom i, all atoms j != i
    base = jnp.arange(A)
    nbh = jnp.stack([jnp.concatenate([base[:i], base[i + 1:]]) for i in range(A)])
    neighbors = jnp.broadcast_to(nbh, (B, A, N)).astype(jnp.int32)

    # small periodic cell + integer offsets in {-1, 0, 1}
    cell = (jnp.eye(3)[None, :, :] * 5.0
            + 0.1 * jax.random.normal(k_cell, (B, 3, 3))).astype(jnp.float32)
    cell_offsets = jax.random.randint(k_off, (B, A, N, 3), -1, 2).astype(jnp.float32)

    # mask with a few zeroed neighbor slots
    neighbor_mask = (jax.random.uniform(k_mask, (B, A, N)) > 0.2).astype(jnp.float32)

    out = atom_distances(positions, neighbors, cell, cell_offsets, neighbor_mask)
    out = jax.block_until_ready(out)

    ref = _reference(positions, neighbors, cell, cell_offsets, neighbor_mask)
    assert out.shape == (B, A, N)
    assert jnp.allclose(out, ref, atol=1e-5, rtol=1e-5), "mismatch vs reference"

    print("KERNEL_OK")
</pallas_src>

<mosaic_0001>
module attributes {stable_mosaic.version = 11 : i64} {
  func.func @_atom_distances_kernel(%arg0: i32, %arg1: i32, %arg2: memref<2x3x3xf32, #tpu.memory_space<smem>>, %arg3: memref<1x3x8xf32, #tpu.memory_space<vmem>>, %arg4: memref<1x8x3xf32, #tpu.memory_space<vmem>>, %arg5: memref<1x8x128xi32, #tpu.memory_space<vmem>>, %arg6: memref<1x3x8x128xf32, #tpu.memory_space<vmem>>, %arg7: memref<1x8x128xf32, #tpu.memory_space<vmem>>, %arg8: memref<1x8x128xf32, #tpu.memory_space<vmem>>) attributes {dimension_semantics = [#tpu.dimension_semantics<parallel>, #tpu.dimension_semantics<parallel>], iteration_bounds = array<i64: 2, 1>, scalar_prefetch = 1 : i64, scratch_operands = 0 : i64, tpu.core_type = #tpu.core_type<tc>, window_params = [{transform_indices = @transform_0, window_bounds = array<i64: 1, 3, 8>}, {transform_indices = @transform_1, window_bounds = array<i64: 1, 8, 3>}, {transform_indices = @transform_2, window_bounds = array<i64: 1, 8, 128>}, {transform_indices = @transform_3, window_bounds = array<i64: 1, 3, 8, 128>}, {transform_indices = @transform_4, window_bounds = array<i64: 1, 8, 128>}, {transform_indices = @transform_5, window_bounds = array<i64: 1, 8, 128>}]} {
    %c0 = arith.constant 0 : index
    %c0_0 = arith.constant 0 : index
    %c0_1 = arith.constant 0 : index
    %0 = vector.load %arg3[%c0, %c0_0, %c0_1] : memref<1x3x8xf32, #tpu.memory_space<vmem>>, vector<1x3x8xf32>
    %1 = vector.shape_cast %0 : vector<1x3x8xf32> to vector<3x8xf32>
    %c0_2 = arith.constant 0 : index
    %c0_3 = arith.constant 0 : index
    %c0_4 = arith.constant 0 : index
    %2 = vector.load %arg4[%c0_2, %c0_3, %c0_4] : memref<1x8x3xf32, #tpu.memory_space<vmem>>, vector<1x8x3xf32>
    %3 = vector.shape_cast %2 : vector<1x8x3xf32> to vector<8x3xf32>
    %c0_5 = arith.constant 0 : index
    %c0_6 = arith.constant 0 : index
    %c0_7 = arith.constant 0 : index
    %4 = vector.load %arg5[%c0_5, %c0_6, %c0_7] : memref<1x8x128xi32, #tpu.memory_space<vmem>>, vector<1x8x128xi32>
    %5 = vector.shape_cast %4 : vector<1x8x128xi32> to vector<8x128xi32>
    %c0_8 = arith.constant 0 : index
    %c0_9 = arith.constant 0 : index
    %c0_10 = arith.constant 0 : index
    %6 = vector.load %arg7[%c0_8, %c0_9, %c0_10] : memref<1x8x128xf32, #tpu.memory_space<vmem>>, vector<1x8x128xf32>
    %7 = vector.shape_cast %6 : vector<1x8x128xf32> to vector<8x128xf32>
    %8 = vector.shape_cast %5 : vector<8x128xi32> to vector<1024xi32>
    %9 = tpu.iota {dimensions = array<i32: 0>} : vector<8x1024xi32>
    %10 = vector.shape_cast %8 : vector<1024xi32> to vector<1x1024xi32>
    %11 = vector.broadcast %10 : vector<1x1024xi32> to vector<8x1024xi32>
    %12 = arith.cmpi eq, %9, %11 : vector<8x1024xi32>
    %13 = arith.extui %12 : vector<8x1024xi1> to vector<8x1024xi32>
    %14 = arith.sitofp %13 : vector<8x1024xi32> to vector<8x1024xf32>
    %cst = arith.constant dense<0.000000e+00> : vector<3x1024xf32>
    %15 = tpu.matmul %1, %14, %cst {dimension_numbers = #tpu.dot_dimension_numbers<[1], [0], [0], [1], [0, 0, 1, 1], [], []>} : vector<3x8xf32>, vector<8x1024xf32>, vector<3x1024xf32> -> vector<3x1024xf32>
    %16 = vector.shape_cast %15 : vector<3x1024xf32> to vector<3x8x128xf32>
    %c0_11 = arith.constant 0 : index
    %c0_12 = arith.constant 0 : index
    %c0_13 = arith.constant 0 : index
    %c0_14 = arith.constant 0 : index
    %17 = vector.load %arg6[%c0_11, %c0_12, %c0_13, %c0_14] : memref<1x3x8x128xf32, #tpu.memory_space<vmem>>, vector<1x1x8x128xf32>
    %18 = vector.shape_cast %17 : vector<1x1x8x128xf32> to vector<8x128xf32>
    %c0_15 = arith.constant 0 : index
    %c1 = arith.constant 1 : index
    %c0_16 = arith.constant 0 : index
    %c0_17 = arith.constant 0 : index
    %19 = vector.load %arg6[%c0_15, %c1, %c0_16, %c0_17] : memref<1x3x8x128xf32, #tpu.memory_space<vmem>>, vector<1x1x8x128xf32>
    %20 = vector.shape_cast %19 : vector<1x1x8x128xf32> to vector<8x128xf32>
    %c0_18 = arith.constant 0 : index
    %c2 = arith.constant 2 : index
    %c0_19 = arith.constant 0 : index
    %c0_20 = arith.constant 0 : index
    %21 = vector.load %arg6[%c0_18, %c2, %c0_19, %c0_20] : memref<1x3x8x128xf32, #tpu.memory_space<vmem>>, vector<1x1x8x128xf32>
    %22 = vector.shape_cast %21 : vector<1x1x8x128xf32> to vector<8x128xf32>
    %23 = vector.extract_strided_slice %16 {offsets = [0, 0, 0], sizes = [1, 8, 128], strides = [1, 1, 1]} : vector<3x8x128xf32> to vector<1x8x128xf32>
    %24 = vector.shape_cast %23 : vector<1x8x128xf32> to vector<8x128xf32>
    %25 = vector.extract_strided_slice %3 {offsets = [0, 0], sizes = [8, 1], strides = [1, 1]} : vector<8x3xf32> to vector<8x1xf32>
    %26 = vector.broadcast %25 : vector<8x1xf32> to vector<8x128xf32>
    %27 = arith.subf %24, %26 : vector<8x128xf32>
    %28 = arith.index_cast %arg0 : i32 to index
    %c0_21 = arith.constant 0 : index
    %c0_22 = arith.constant 0 : index
    %29 = memref.load %arg2[%28, %c0_21, %c0_22] : memref<2x3x3xf32, #tpu.memory_space<smem>>
    %30 = vector.broadcast %29 : f32 to vector<8x128xf32>
    %31 = arith.mulf %30, %18 : vector<8x128xf32>
    %32 = arith.addf %27, %31 : vector<8x128xf32>
    %33 = arith.index_cast %arg0 : i32 to index
    %c1_23 = arith.constant 1 : index
    %c0_24 = arith.constant 0 : index
    %34 = memref.load %arg2[%33, %c1_23, %c0_24] : memref<2x3x3xf32, #tpu.memory_space<smem>>
    %35 = vector.broadcast %34 : f32 to vector<8x128xf32>
    %36 = arith.mulf %35, %20 : vector<8x128xf32>
    %37 = arith.addf %32, %36 : vector<8x128xf32>
    %38 = arith.index_cast %arg0 : i32 to index
    %c2_25 = arith.constant 2 : index
    %c0_26 = arith.constant 0 : index
    %39 = memref.load %arg2[%38, %c2_25, %c0_26] : memref<2x3x3xf32, #tpu.memory_space<smem>>
    %40 = vector.broadcast %39 : f32 to vector<8x128xf32>
    %41 = arith.mulf %40, %22 : vector<8x128xf32>
    %42 = arith.addf %37, %41 : vector<8x128xf32>
    %43 = arith.mulf %42, %42 : vector<8x128xf32>
    %44 = vector.extract_strided_slice %16 {offsets = [1, 0, 0], sizes = [1, 8, 128], strides = [1, 1, 1]} : vector<3x8x128xf32> to vector<1x8x128xf32>
    %45 = vector.shape_cast %44 : vector<1x8x128xf32> to vector<8x128xf32>
    %46 = vector.extract_strided_slice %3 {offsets = [0, 1], sizes = [8, 1], strides = [1, 1]} : vector<8x3xf32> to vector<8x1xf32>
    %47 = vector.broadcast %46 : vector<8x1xf32> to vector<8x128xf32>
    %48 = arith.subf %45, %47 : vector<8x128xf32>
    %49 = arith.index_cast %arg0 : i32 to index
    %c0_27 = arith.constant 0 : index
    %c1_28 = arith.constant 1 : index
    %50 = memref.load %arg2[%49, %c0_27, %c1_28] : memref<2x3x3xf32, #tpu.memory_space<smem>>
    %51 = vector.broadcast %50 : f32 to vector<8x128xf32>
    %52 = arith.mulf %51, %18 : vector<8x128xf32>
    %53 = arith.addf %48, %52 : vector<8x128xf32>
    %54 = arith.index_cast %arg0 : i32 to index
    %c1_29 = arith.constant 1 : index
    %c1_30 = arith.constant 1 : index
    %55 = memref.load %arg2[%54, %c1_29, %c1_30] : memref<2x3x3xf32, #tpu.memory_space<smem>>
    %56 = vector.broadcast %55 : f32 to vector<8x128xf32>
    %57 = arith.mulf %56, %20 : vector<8x128xf32>
    %58 = arith.addf %53, %57 : vector<8x128xf32>
    %59 = arith.index_cast %arg0 : i32 to index
    %c2_31 = arith.constant 2 : index
    %c1_32 = arith.constant 1 : index
    %60 = memref.load %arg2[%59, %c2_31, %c1_32] : memref<2x3x3xf32, #tpu.memory_space<smem>>
    %61 = vector.broadcast %60 : f32 to vector<8x128xf32>
    %62 = arith.mulf %61, %22 : vector<8x128xf32>
    %63 = arith.addf %58, %62 : vector<8x128xf32>
    %64 = arith.mulf %63, %63 : vector<8x128xf32>
    %65 = arith.addf %43, %64 : vector<8x128xf32>
    %66 = vector.extract_strided_slice %16 {offsets = [2, 0, 0], sizes = [1, 8, 128], strides = [1, 1, 1]} : vector<3x8x128xf32> to vector<1x8x128xf32>
    %67 = vector.shape_cast %66 : vector<1x8x128xf32> to vector<8x128xf32>
    %68 = vector.extract_strided_slice %3 {offsets = [0, 2], sizes = [8, 1], strides = [1, 1]} : vector<8x3xf32> to vector<8x1xf32>
    %69 = vector.broadcast %68 : vector<8x1xf32> to vector<8x128xf32>
    %70 = arith.subf %67, %69 : vector<8x128xf32>
    %71 = arith.index_cast %arg0 : i32 to index
    %c0_33 = arith.constant 0 : index
    %c2_34 = arith.constant 2 : index
    %72 = memref.load %arg2[%71, %c0_33, %c2_34] : memref<2x3x3xf32, #tpu.memory_space<smem>>
    %73 = vector.broadcast %72 : f32 to vector<8x128xf32>
    %74 = arith.mulf %73, %18 : vector<8x128xf32>
    %75 = arith.addf %70, %74 : vector<8x128xf32>
    %76 = arith.index_cast %arg0 : i32 to index
    %c1_35 = arith.constant 1 : index
    %c2_36 = arith.constant 2 : index
    %77 = memref.load %arg2[%76, %c1_35, %c2_36] : memref<2x3x3xf32, #tpu.memory_space<smem>>
    %78 = vector.broadcast %77 : f32 to vector<8x128xf32>
    %79 = arith.mulf %78, %20 : vector<8x128xf32>
    %80 = arith.addf %75, %79 : vector<8x128xf32>
    %81 = arith.index_cast %arg0 : i32 to index
    %c2_37 = arith.constant 2 : index
    %c2_38 = arith.constant 2 : index
    %82 = memref.load %arg2[%81, %c2_37, %c2_38] : memref<2x3x3xf32, #tpu.memory_space<smem>>
    %83 = vector.broadcast %82 : f32 to vector<8x128xf32>
    %84 = arith.mulf %83, %22 : vector<8x128xf32>
    %85 = arith.addf %80, %84 : vector<8x128xf32>
    %86 = arith.mulf %85, %85 : vector<8x128xf32>
    %87 = arith.addf %65, %86 : vector<8x128xf32>
    %88 = math.sqrt %87 : vector<8x128xf32>
    %89 = arith.mulf %88, %7 : vector<8x128xf32>
    %c0_39 = arith.constant 0 : index
    %c0_40 = arith.constant 0 : index
    %c0_41 = arith.constant 0 : index
    %90 = vector.load %arg8[%c0_39, %c0_40, %c0_41] : memref<1x8x128xf32, #tpu.memory_space<vmem>>, vector<1x8x128xf32>
    %91 = vector.shape_cast %90 : vector<1x8x128xf32> to vector<8x128xf32>
    %92 = vector.shape_cast %89 : vector<8x128xf32> to vector<1x8x128xf32>
    tpu.vector_store %arg8[%c0_39, %c0_40, %c0_41], %92 {strides = array<i32>} : memref<1x8x128xf32, #tpu.memory_space<vmem>>, vector<1x8x128xf32>,
    return
  }
  func.func @transform_0(%arg0: i32, %arg1: i32, %arg2: memref<2x3x3xf32, #tpu.memory_space<smem>>) -> (i32, i32, i32) {
    %c0_i32 = arith.constant 0 : i32
    %c0_i32_0 = arith.constant 0 : i32
    %c0_i32_1 = arith.constant 0 : i32
    return %arg0, %c0_i32, %c0_i32_0 : i32, i32, i32
  }
  func.func @transform_1(%arg0: i32, %arg1: i32, %arg2: memref<2x3x3xf32, #tpu.memory_space<smem>>) -> (i32, i32, i32) {
    %c0_i32 = arith.constant 0 : i32
    %c0_i32_0 = arith.constant 0 : i32
    return %arg0, %arg1, %c0_i32 : i32, i32, i32
  }
  func.func @transform_2(%arg0: i32, %arg1: i32, %arg2: memref<2x3x3xf32, #tpu.memory_space<smem>>) -> (i32, i32, i32) {
    %c0_i32 = arith.constant 0 : i32
    %c0_i32_0 = arith.constant 0 : i32
    return %arg0, %arg1, %c0_i32 : i32, i32, i32
  }
  func.func @transform_3(%arg0: i32, %arg1: i32, %arg2: memref<2x3x3xf32, #tpu.memory_space<smem>>) -> (i32, i32, i32, i32) {
    %c0_i32 = arith.constant 0 : i32
    %c0_i32_0 = arith.constant 0 : i32
    %c0_i32_1 = arith.constant 0 : i32
    return %arg0, %c0_i32, %arg1, %c0_i32_0 : i32, i32, i32, i32
  }
  func.func @transform_4(%arg0: i32, %arg1: i32, %arg2: memref<2x3x3xf32, #tpu.memory_space<smem>>) -> (i32, i32, i32) {
    %c0_i32 = arith.constant 0 : i32
    %c0_i32_0 = arith.constant 0 : i32
    return %arg0, %arg1, %c0_i32 : i32, i32, i32
  }
  func.func @transform_5(%arg0: i32, %arg1: i32, %arg2: memref<2x3x3xf32, #tpu.memory_space<smem>>) -> (i32, i32, i32) {
    %c0_i32 = arith.constant 0 : i32
    %c0_i32_0 = arith.constant 0 : i32
    return %arg0, %arg1, %c0_i32 : i32, i32, i32
  }
}

</mosaic_0001>

<llo_original>
// kernel: tpu_custom_call.1
$region0: #{tpu_custom_call.1}
  #allocation0 [shape = 'u32[]', space=smem, size = 0x4, offset = 0x4, fixed_abs, tag = 'smem constant byte address 0x4 - core index']
  #allocation1 [shape = 'u32[144,128]{1,0:T(1,128)}', space=vmem, size = 0x12000, scoped, tag = 'internal scratch']
  #allocation2 [shape = 's32[1]{0}', space=sflag, size = 0x4, scoped, tag = 'scoped memory for tpu_custom_call.1']
  #allocation3 [shape = 'u8[4096]{0}', space=smem, size = 0x1000, scoped, tag = 'prefetched SMEM operand 0']
  %s0 = inlined_call_operand.vmem [shape: f32[2,3,3], index: 0, kind: input, shape index: {}]
  %s1 = inlined_call_operand.vmem [shape: f32[2,3,8], index: 1, kind: input, shape index: {}]
  %s2 = inlined_call_operand.vmem [shape: f32[2,8,3], index: 2, kind: input, shape index: {}]
  %s3 = inlined_call_operand.vmem [shape: s32[2,8,128], index: 3, kind: input, shape index: {}]
  %s4 = inlined_call_operand.vmem [shape: f32[2,3,8,128], index: 4, kind: input, shape index: {}]
  %s5 = inlined_call_operand.hbm [shape: f32[2,8,128], index: 5, kind: input, shape index: {}]
  %s6 = inlined_call_operand.hbm [shape: f32[2,8,128], index: 6, kind: output, shape index: {}]
  %s7 = sld [smem:[#allocation0]]
  $region57: #{tpu_custom_call.1} parent=0
    _
  %s9 = ssub.s32 1, %s7
  %s10 = scalar_select 0, %s9, %s7
  %s11 = sshll.u32 %s0, 4
  %s12 = int_to_ptr.vmem [resolvable:$true] %s11
  %14 = dma.vmem_to_smem %s12, 128, [#allocation3], [#allocation2]
  %15 = dma.done [#allocation2], 128
  %16 = sfence
  $region1: #{tpu_custom_call.1} parent=0
    #allocation4 [shape = 'u8[8192]{0}', space=vmem, size = 0x2000, scoped, tag = 'input window, operand 5']
    #allocation5 [shape = 's32[2]{0}', space=sflag, size = 0x8, scoped, tag = 'scoped memory for tpu_custom_call.1']
    #allocation6 [shape = 's32[2]{0}', space=sflag, size = 0x8, scoped, tag = 'scoped memory for tpu_custom_call.1']
    #allocation7 [shape = 'u8[8192]{0}', space=vmem, size = 0x2000, scoped, tag = 'output window, operand 0']
    %17 = vsyncpa [#allocation5], 0
    %s18 = scalar_lea.sflag [#allocation5], 1
    %19 = vsyncpa %s18, 0
    %20 = vsyncpa [#allocation6], 0
    %s21 = scalar_lea.sflag [#allocation6], 1
    %22 = vsyncpa %s21, 0
    loop: start=0, step=1, limit=4
    $region2: #{tpu_custom_call.1} parent=1 // loop_pre_header
      _
    $region3: #{tpu_custom_call.1} parent=1 // loop_header
      %s24 = sphi 0, %s28
      %p25 = scmp.ge.s32.totalorder %s24, 4
      %s31 = sphi 0, %s43
      %s32 = sphi 0, %s39
      %s33 = sphi 0, %s31
      %s34 = sphi 0, %s32
      %s35 = sphi 0, %s33
      %s36 = sphi 0, %s34
      %s46 = sphi 0, %s48
      %s49 = sphi 0, %s46
      %s50 = sphi 0, %s49
      %s66 = sphi 0, %s50
      %s74 = sphi 0, %s76
      %s77 = sphi 0, %s74
      %s78 = sphi 0, %s77
      %s94 = sphi 0, %s78
      %s102 = sphi 0, %s104
      %s105 = sphi 0, %s102
      %s106 = sphi 0, %s105
      %s122 = sphi 0, %s106
      %s130 = sphi 0, %s132
      %s133 = sphi 0, %s130
      %s134 = sphi 0, %s133
      %s150 = sphi 0, %s134
      %s158 = sphi 0, %s160
      %s161 = sphi 0, %s158
      %s162 = sphi 0, %s161
      %s178 = sphi 0, %s162
      %s186 = sphi 0, %s188
      %s189 = sphi 0, %s186
      %s190 = sphi 0, %s189
      %s206 = sphi 0, %s190
    $region4: #{tpu_custom_call.1} parent=1 // loop_header_branch
      %27 = sbr.rel (%p25) target = $region8
    $region5: #{tpu_custom_call.1} parent=1 // loop_body
      %s29 = ssub.s32 %s24, 1
      %s30 = ssub.s32 %s24, 2
      %s37 = sadd.s32 1, %s32
      %p38 = scmp.ge.s32.totalorder %s37, 1
      %s39 = scalar_select %p38, 0, %s37
      %s40 = sadd.s32 1, %s31
      %s41 = scalar_select %p38, %s40, %s31
      %p42 = scmp.ge.s32.totalorder %s41, 2
      %s43 = scalar_select %p42, 0, %s41
      %s44 = ssub.s32 %s31, %s43
      %p45 = scmp.eq.s32.totalorder %s44, 0
      %s47 = sadd.s32 %s46, 1
      %s48 = scalar_select %p45, %s46, %s47
      %p51 = pneg %p45
      %p52 = scmp.eq.s32.totalorder %s24, 1
      %p53 = por %p51, %p52
      %p54 = scmp.ne.s32.totalorder %s46, %s49
      %p55 = scmp.eq.s32.totalorder %s24, 0
      %p56 = por %p54, %p55
      %p57 = scmp.ne.s32.totalorder %s46, %s49
      %p58 = scmp.eq.s32.totalorder %s29, 1
      %p59 = por %p57, %p58
      %p60 = scmp.ne.s32.totalorder %s49, %s50
      %p61 = scmp.eq.s32.totalorder %s29, 0
      %p62 = por %p60, %p61
      %p63 = scmp.ne.s32.totalorder %s49, %s50
      %p64 = scmp.eq.s32.totalorder %s30, 1
      %p65 = por %p63, %p64
      %p67 = scmp.ne.s32.totalorder %s50, %s66
      %p68 = scmp.eq.s32.totalorder %s30, 0
      %p69 = por %p67, %p68
      %s70 = ssub.s32 %s31, %s43
      %s71 = ssub.s32 %s32, %s39
      %s72 = sor.u32 %s70, %s71
      %p73 = scmp.eq.s32.totalorder %s72, 0
      %s75 = sadd.s32 %s74, 1
      %s76 = scalar_select %p73, %s74, %s75
      %p79 = pneg %p73
      %p80 = scmp.eq.s32.totalorder %s24, 1
      %p81 = por %p79, %p80
      %p82 = scmp.ne.s32.totalorder %s74, %s77
      %p83 = scmp.eq.s32.totalorder %s24, 0
      %p84 = por %p82, %p83
      %p85 = scmp.ne.s32.totalorder %s74, %s77
      %p86 = scmp.eq.s32.totalorder %s29, 1
      %p87 = por %p85, %p86
      %p88 = scmp.ne.s32.totalorder %s77, %s78
      %p89 = scmp.eq.s32.totalorder %s29, 0
      %p90 = por %p88, %p89
      %p91 = scmp.ne.s32.totalorder %s77, %s78
      %p92 = scmp.eq.s32.totalorder %s30, 1
      %p93 = por %p91, %p92
      %p95 = scmp.ne.s32.totalorder %s78, %s94
      %p96 = scmp.eq.s32.totalorder %s30, 0
      %p97 = por %p95, %p96
      %s98 = ssub.s32 %s31, %s43
      %s99 = ssub.s32 %s32, %s39
      %s100 = sor.u32 %s98, %s99
      %p101 = scmp.eq.s32.totalorder %s100, 0
      %s103 = sadd.s32 %s102, 1
      %s104 = scalar_select %p101, %s102, %s103
      %p107 = pneg %p101
      %p108 = scmp.eq.s32.totalorder %s24, 1
      %p109 = por %p107, %p108
      %p110 = scmp.ne.s32.totalorder %s102, %s105
      %p111 = scmp.eq.s32.totalorder %s24, 0
      %p112 = por %p110, %p111
      %p113 = scmp.ne.s32.totalorder %s102, %s105
      %p114 = scmp.eq.s32.totalorder %s29, 1
      %p115 = por %p113, %p114
      %p116 = scmp.ne.s32.totalorder %s105, %s106
      %p117 = scmp.eq.s32.totalorder %s29, 0
      %p118 = por %p116, %p117
      %p119 = scmp.ne.s32.totalorder %s105, %s106
      %p120 = scmp.eq.s32.totalorder %s30, 1
      %p121 = por %p119, %p120
      %p123 = scmp.ne.s32.totalorder %s106, %s122
      %p124 = scmp.eq.s32.totalorder %s30, 0
      %p125 = por %p123, %p124
      %s126 = ssub.s32 %s31, %s43
      %s127 = ssub.s32 %s32, %s39
      %s128 = sor.u32 %s126, %s127
      %p129 = scmp.eq.s32.totalorder %s128, 0
      %s131 = sadd.s32 %s130, 1
      %s132 = scalar_select %p129, %s130, %s131
      %p135 = pneg %p129
      %p136 = scmp.eq.s32.totalorder %s24, 1
      %p137 = por %p135, %p136
      %p138 = scmp.ne.s32.totalorder %s130, %s133
      %p139 = scmp.eq.s32.totalorder %s24, 0
      %p140 = por %p138, %p139
      %p141 = scmp.ne.s32.totalorder %s130, %s133
      %p142 = scmp.eq.s32.totalorder %s29, 1
      %p143 = por %p141, %p142
      %p144 = scmp.ne.s32.totalorder %s133, %s134
      %p145 = scmp.eq.s32.totalorder %s29, 0
      %p146 = por %p144, %p145
      %p147 = scmp.ne.s32.totalorder %s133, %s134
      %p148 = scmp.eq.s32.totalorder %s30, 1
      %p149 = por %p147, %p148
      %p151 = scmp.ne.s32.totalorder %s134, %s150
      %p152 = scmp.eq.s32.totalorder %s30, 0
      %p153 = por %p151, %p152
      %s154 = ssub.s32 %s31, %s43
      %s155 = ssub.s32 %s32, %s39
      %s156 = sor.u32 %s154, %s155
      %p157 = scmp.eq.s32.totalorder %s156, 0
      %s159 = sadd.s32 %s158, 1
      %s160 = scalar_select %p157, %s158, %s159
      %p163 = pneg %p157
      %p164 = scmp.eq.s32.totalorder %s24, 1
      %p165 = por %p163, %p164
      %p166 = scmp.ne.s32.totalorder %s158, %s161
      %p167 = scmp.eq.s32.totalorder %s24, 0
      %p168 = por %p166, %p167
      %p169 = scmp.ne.s32.totalorder %s158, %s161
      %p170 = scmp.eq.s32.totalorder %s29, 1
      %p171 = por %p169, %p170
      %p172 = scmp.ne.s32.totalorder %s161, %s162
      %p173 = scmp.eq.s32.totalorder %s29, 0
      %p174 = por %p172, %p173
      %p175 = scmp.ne.s32.totalorder %s161, %s162
      %p176 = scmp.eq.s32.totalorder %s30, 1
      %p177 = por %p175, %p176
      %p179 = scmp.ne.s32.totalorder %s162, %s178
      %p180 = scmp.eq.s32.totalorder %s30, 0
      %p181 = por %p179, %p180
      %s182 = ssub.s32 %s31, %s43
      %s183 = ssub.s32 %s32, %s39
      %s184 = sor.u32 %s182, %s183
      %p185 = scmp.eq.s32.totalorder %s184, 0
      %s187 = sadd.s32 %s186, 1
      %s188 = scalar_select %p185, %s186, %s187
      %p191 = pneg %p185
      %p192 = scmp.eq.s32.totalorder %s24, 1
      %p193 = por %p191, %p192
      %p194 = scmp.ne.s32.totalorder %s186, %s189
      %p195 = scmp.eq.s32.totalorder %s24, 0
      %p196 = por %p194, %p195
      %p197 = scmp.ne.s32.totalorder %s186, %s189
      %p198 = scmp.eq.s32.totalorder %s29, 1
      %p199 = por %p197, %p198
      %p200 = scmp.ne.s32.totalorder %s189, %s190
      %p201 = scmp.eq.s32.totalorder %s29, 0
      %p202 = por %p200, %p201
      %p203 = scmp.ne.s32.totalorder %s189, %s190
      %p204 = scmp.eq.s32.totalorder %s30, 1
      %p205 = por %p203, %p204
      %p207 = scmp.ne.s32.totalorder %s190, %s206
      %p208 = scmp.eq.s32.totalorder %s30, 0
      %p209 = por %p207, %p208
      %p210 = scmp.le.s32.totalorder 1, %s24
      %p211 = scmp.lt.s32.totalorder %s24, 3
      %p212 = pnand %p210, %p211
      %p213 = pneg %p212
      // Predicated region
      $region9: #{tpu_custom_call.1} parent=5 // pred_check
        _
      $region10: #{tpu_custom_call.1} parent=5 // pred_check_branch
        %215 = sbr.rel (%p212) target = $region12
      $region11: #{tpu_custom_call.1} parent=5 // pred_region
        %s216 = ssub.s32 %s24, 1
      $region12: #{tpu_custom_call.1} parent=5 // pred_fallthru
        _
      %p217 = scmp.lt.s32.totalorder %s24, 2
      // Predicated region
      $region13: #{tpu_custom_call.1} parent=5 // pred_check
        %p218 = pneg %p217
      $region14: #{tpu_custom_call.1} parent=5 // pred_check_branch
        %220 = sbr.rel (%p218) target = $region16
      $region15: #{tpu_custom_call.1} parent=5 // pred_region
        // Predicated region
        $region17: #{tpu_custom_call.1} parent=15 // pred_check
          %p221 = pneg %p56
        $region18: #{tpu_custom_call.1} parent=15 // pred_check_branch
          %223 = sbr.rel (%p221) target = $region20
        $region19: #{tpu_custom_call.1} parent=15 // pred_region
          %p224 = scmp.lt.s32.totalorder %s31, 1
          %s225 = scalar_select %p224, %s31, 1
          %s226 = smul.addr %s225, 4
          %s227 = scalar_lea.vmem %s1, %s226
        $region20: #{tpu_custom_call.1} parent=15 // pred_fallthru
          _
        // Predicated region
        $region21: #{tpu_custom_call.1} parent=15 // pred_check
          %p228 = pneg %p84
        $region22: #{tpu_custom_call.1} parent=15 // pred_check_branch
          %230 = sbr.rel (%p228) target = $region24
        $region23: #{tpu_custom_call.1} parent=15 // pred_region
          %p231 = scmp.lt.s32.totalorder %s31, 1
          %s232 = scalar_select %p231, %s31, 1
          %p233 = scmp.lt.s32.totalorder %s32, 0
          %s234 = scalar_select %p233, %s32, 0
          %s235 = sadd.s32 %s234, %s232
          %s236 = smul.addr %s235, 8
          %s237 = scalar_lea.vmem %s2, %s236
        $region24: #{tpu_custom_call.1} parent=15 // pred_fallthru
          _
        // Predicated region
        $region25: #{tpu_custom_call.1} parent=15 // pred_check
          %p238 = pneg %p112
        $region26: #{tpu_custom_call.1} parent=15 // pred_check_branch
          %240 = sbr.rel (%p238) target = $region28
        $region27: #{tpu_custom_call.1} parent=15 // pred_region
          %p241 = scmp.lt.s32.totalorder %s31, 1
          %s242 = scalar_select %p241, %s31, 1
          %p243 = scmp.lt.s32.totalorder %s32, 0
          %s244 = scalar_select %p243, %s32, 0
          %s245 = sadd.s32 %s244, %s242
          %s246 = smul.addr %s245, 8
          %s247 = scalar_lea.vmem %s3, %s246
        $region28: #{tpu_custom_call.1} parent=15 // pred_fallthru
          _
        // Predicated region
        $region29: #{tpu_custom_call.1} parent=15 // pred_check
          %p248 = pneg %p140
        $region30: #{tpu_custom_call.1} parent=15 // pred_check_branch
          %250 = sbr.rel (%p248) target = $region32
        $region31: #{tpu_custom_call.1} parent=15 // pred_region
          %p251 = scmp.lt.s32.totalorder %s31, 1
          %s252 = scalar_select %p251, %s31, 1
          %p253 = scmp.lt.s32.totalorder %s32, 0
          %s254 = scalar_select %p253, %s32, 0
          %s255 = smul.addr %s252, 3
          %s256 = sadd.s32 %s254, %s255
          %s257 = smul.addr %s256, 8
          %s258 = scalar_lea.vmem %s4, %s257
        $region32: #{tpu_custom_call.1} parent=15 // pred_fallthru
          _
        // Predicated region
        $region33: #{tpu_custom_call.1} parent=15 // pred_check
          %p259 = pneg %p168
        $region34: #{tpu_custom_call.1} parent=15 // pred_check_branch
          %261 = sbr.rel (%p259) target = $region36
        $region35: #{tpu_custom_call.1} parent=15 // pred_region
          %s262 = sand.u32 %s158, 1
          %s263 = scalar_lea.sflag [#allocation5], %s262
          %s264 = sand.u32 %s158, 1
          %s265 = smul.addr %s264, 8
          %s266 = scalar_lea.vmem [#allocation4], %s265
          %s268 = ssub.s32 128, 128
          %269 = vsyncadd %s263, %s268
          %s270 = sadd.s32 %s32, %s31
          %s271 = smul.addr %s270, 128
          %s272 = scalar_lea.hbm %s5, %s271
          %s274 = sshll.u32 %s266, 4
          %s275 = int_to_ptr.vmem [resolvable:$true] %s274
          %277 = dma.hbm_to_vmem [thread:$0]  %s272, 128, %s275, %s263
        $region36: #{tpu_custom_call.1} parent=15 // pred_fallthru
          _
      $region16: #{tpu_custom_call.1} parent=5 // pred_fallthru
        _
      %p278 = scmp.le.s32.totalorder 1, %s24
      %p279 = scmp.lt.s32.totalorder %s24, 3
      %p280 = pnand %p278, %p279
      %p281 = pneg %p280
      // Predicated region
      $region37: #{tpu_custom_call.1} parent=5 // pred_check
        _
      $region38: #{tpu_custom_call.1} parent=5 // pred_check_branch
        %283 = sbr.rel (%p280) target = $region40
      $region39: #{tpu_custom_call.1} parent=5 // pred_region
        %s284 = ssub.s32 %s24, 1
        %s285 = sand.u32 %s161, 1
        %s286 = scalar_lea.sflag [#allocation5], %s285
        %s287 = sand.u32 %s161, 1
        %s288 = smul.addr %s287, 8
        %s289 = scalar_lea.vmem [#allocation4], %s288
        // Predicated region
        $region41: #{tpu_custom_call.1} parent=39 // pred_check
          %p290 = pneg %p174
        $region42: #{tpu_custom_call.1} parent=39 // pred_check_branch
          %292 = sbr.rel (%p290) target = $region44
        $region43: #{tpu_custom_call.1} parent=39 // pred_region
          %293 = dma.done %s286, 128
        $region44: #{tpu_custom_call.1} parent=39 // pred_fallthru
          _
        %p294 = scmp.lt.s32.totalorder %s33, 1
        %s295 = scalar_select %p294, %s33, 1
        %s296 = smul.addr %s295, 4
        %s297 = scalar_lea.vmem %s1, %s296
        %p298 = pneg %p62
        %p299 = pneg %p59
        %p300 = scmp.lt.s32.totalorder %s33, 1
        %s301 = scalar_select %p300, %s33, 1
        %p302 = scmp.lt.s32.totalorder %s34, 0
        %s303 = scalar_select %p302, %s34, 0
        %s304 = sadd.s32 %s303, %s301
        %s305 = smul.addr %s304, 8
        %s306 = scalar_lea.vmem %s2, %s305
        %p307 = pneg %p90
        %p308 = pneg %p87
        %p309 = scmp.lt.s32.totalorder %s33, 1
        %s310 = scalar_select %p309, %s33, 1
        %p311 = scmp.lt.s32.totalorder %s34, 0
        %s312 = scalar_select %p311, %s34, 0
        %s313 = sadd.s32 %s312, %s310
        %s314 = smul.addr %s313, 8
        %s315 = scalar_lea.vmem %s3, %s314
        %p316 = pneg %p118
        %p317 = pneg %p115
        %p318 = scmp.lt.s32.totalorder %s33, 1
        %s319 = scalar_select %p318, %s33, 1
        %p320 = scmp.lt.s32.totalorder %s34, 0
        %s321 = scalar_select %p320, %s34, 0
        %s322 = smul.addr %s319, 3
        %s323 = sadd.s32 %s321, %s322
        %s324 = smul.addr %s323, 8
        %s325 = scalar_lea.vmem %s4, %s324
        %p326 = pneg %p146
        %p327 = pneg %p143
        %s328 = sand.u32 %s161, 1
        %s329 = scalar_lea.sflag [#allocation5], %s328
        %s330 = sand.u32 %s161, 1
        %s331 = smul.addr %s330, 8
        %s332 = scalar_lea.vmem [#allocation4], %s331
        %p333 = pneg %p174
        %p334 = pneg %p171
        %p335 = pneg %p202
        %p336 = pneg %p199
        %s337 = sand.u32 %s189, 1
        %s338 = scalar_lea.sflag [#allocation6], %s337
        %s339 = sand.u32 %s189, 1
        %s340 = smul.addr %s339, 8
        %s341 = scalar_lea.vmem [#allocation7], %s340
        %p342 = scmp.lt.s32.totalorder %s33, 1
        %s343 = scalar_select %p342, %s33, 1
        %s344 = smul.addr %s343, 4
        %s345 = scalar_lea.vmem %s1, %s344
        %p346 = scmp.lt.s32.totalorder %s33, 1
        %s347 = scalar_select %p346, %s33, 1
        %p348 = scmp.lt.s32.totalorder %s34, 0
        %s349 = scalar_select %p348, %s34, 0
        %s350 = sadd.s32 %s349, %s347
        %s351 = smul.addr %s350, 8
        %s352 = scalar_lea.vmem %s2, %s351
        %p353 = scmp.lt.s32.totalorder %s33, 1
        %s354 = scalar_select %p353, %s33, 1
        %p355 = scmp.lt.s32.totalorder %s34, 0
        %s356 = scalar_select %p355, %s34, 0
        %s357 = sadd.s32 %s356, %s354
        %s358 = smul.addr %s357, 8
        %s359 = scalar_lea.vmem %s3, %s358
        %p360 = scmp.lt.s32.totalorder %s33, 1
        %s361 = scalar_select %p360, %s33, 1
        %p362 = scmp.lt.s32.totalorder %s34, 0
        %s363 = scalar_select %p362, %s34, 0
        %s364 = smul.addr %s361, 3
        %s365 = sadd.s32 %s363, %s364
        %s366 = smul.addr %s365, 8
        %s367 = scalar_lea.vmem %s4, %s366
        %v368 = vld [vmem:[%s345] sm:$0x7]
        %v369 = vld [vmem:[%s352] sm:$0xff]
        %v370 = vld [vmem:[%s289] sm:$0xff]
        %v371 = vld [vmem:[%s359] ss:$8 sm:$0x1]
        %s372 = scalar_lea.vmem %s359, 1
        %v373 = vld [vmem:[%s372] ss:$8 sm:$0x1]
        %s374 = scalar_lea.vmem %s359, 2
        %v375 = vld [vmem:[%s374] ss:$8 sm:$0x1]
        %s376 = scalar_lea.vmem %s359, 3
        %v377 = vld [vmem:[%s376] ss:$8 sm:$0x1]
        %s378 = scalar_lea.vmem %s359, 4
        %v379 = vld [vmem:[%s378] ss:$8 sm:$0x1]
        %s380 = scalar_lea.vmem %s359, 5
        %v381 = vld [vmem:[%s380] ss:$8 sm:$0x1]
        %s382 = scalar_lea.vmem %s359, 6
        %v383 = vld [vmem:[%s382] ss:$8 sm:$0x1]
        %s384 = scalar_lea.vmem %s359, 7
        %v385 = vld [vmem:[%s384] ss:$8 sm:$0x1]
        %v386 = vlaneseq
        %v387 = vshrl.u32 %v386, 7
        %v388 = vlaneseq
        %v389 = vshrl.u32 %v388, 7
        %v390 = vsub.s32 0, %v389
        %v391 = vrot.slane %v371, %v390
        %v392 = vlaneseq
        %v393 = vshrl.u32 %v392, 7
        %v394 = vsub.s32 0, %v393
        %v395 = vrot.slane %v373, %v394
        %v396 = vlaneseq
        %v397 = vshrl.u32 %v396, 7
        %v398 = vsub.s32 0, %v397
        %v399 = vrot.slane %v375, %v398
        %v400 = vlaneseq
        %v401 = vshrl.u32 %v400, 7
        %v402 = vsub.s32 0, %v401
        %v403 = vrot.slane %v377, %v402
        %v404 = vlaneseq
        %v405 = vshrl.u32 %v404, 7
        %v406 = vsub.s32 0, %v405
        %v407 = vrot.slane %v379, %v406
        %v408 = vlaneseq
        %v409 = vshrl.u32 %v408, 7
        %v410 = vsub.s32 0, %v409
        %v411 = vrot.slane %v381, %v410
        %v412 = vlaneseq
        %v413 = vshrl.u32 %v412, 7
        %v414 = vsub.s32 0, %v413
        %v415 = vrot.slane %v383, %v414
        %v416 = vlaneseq
        %v417 = vshrl.u32 %v416, 7
        %v418 = vsub.s32 0, %v417
        %v419 = vrot.slane %v385, %v418
        %vm420 = vcmp.eq.s32.totalorder %v387, %v391
        %vm421 = vcmp.eq.s32.totalorder %v387, %v395
        %vm422 = vcmp.eq.s32.totalorder %v387, %v399
        %vm423 = vcmp.eq.s32.totalorder %v387, %v403
        %vm424 = vcmp.eq.s32.totalorder %v387, %v407
        %vm425 = vcmp.eq.s32.totalorder %v387, %v411
        %vm426 = vcmp.eq.s32.totalorder %v387, %v415
        %vm427 = vcmp.eq.s32.totalorder %v387, %v419
        %v428 = vsel %vm420, 1, 0
        %v429 = vsel %vm421, 1, 0
        %v430 = vsel %vm422, 1, 0
        %v431 = vsel %vm423, 1, 0
        %v432 = vsel %vm424, 1, 0
        %v433 = vsel %vm425, 1, 0
        %v434 = vsel %vm426, 1, 0
        %v435 = vsel %vm427, 1, 0
        %v436 = vcvt.s32.f32 %v428
        %v437 = vcvt.s32.f32 %v429
        %v438 = vcvt.s32.f32 %v430
        %v439 = vcvt.s32.f32 %v431
        %v440 = vcvt.s32.f32 %v432
        %v441 = vcvt.s32.f32 %v433
        %v442 = vcvt.s32.f32 %v434
        %v443 = vcvt.s32.f32 %v435
        %vm444 = vcmask 64512
        %v446 = vsel %vm444, %v368, 0
        %448 = vmatprep.subr.mxu0 %v437
        %449 = vmatpush1.msra.mxu0 %v436
        %450 = vmatprep.subr.mxu0 0.0
        %451 = vmatpush1.msra.mxu0 0.0
        %452 = vmatprep.subr.mxu0 0.0
        %453 = vmatpush1.msra.mxu0 0.0
        %454 = vmatprep.subr.mxu0 0.0
        %455 = vmatpush1.msra.mxu0 0.0
        %456 = vmatprep.subr.mxu0 0.0
        %457 = vmatpush1.msra.mxu0 0.0
        %458 = vmatprep.subr.mxu0 0.0
        %459 = vmatpush1.msra.mxu0 0.0
        %460 = vmatprep.subr.mxu0 0.0
        %461 = vmatpush1.msra.mxu0 0.0
        %462 = vmatprep.subr.mxu0 0.0
        %463 = vmatpush1.msra.mxu0 0.0
        %464 = vmatprep.subr.mxu0 0.0
        %465 = vmatpush1.msra.mxu0 0.0
        %466 = vmatprep.subr.mxu0 0.0
        %467 = vmatpush1.msra.mxu0 0.0
        %468 = vmatprep.subr.mxu0 0.0
        %469 = vmatpush1.msra.mxu0 0.0
        %470 = vmatprep.subr.mxu0 0.0
        %471 = vmatpush1.msra.mxu0 0.0
        %472 = vmatprep.subr.mxu0 0.0
        %473 = vmatpush1.msra.mxu0 0.0
        %474 = vmatprep.subr.mxu0 0.0
        %475 = vmatpush1.msra.mxu0 0.0
        %476 = vmatprep.subr.mxu0 0.0
        %477 = vmatpush1.msra.mxu0 0.0
        %478 = vmatprep.subr.mxu0 0.0
        %479 = vmatpush1.msra.mxu0 0.0
        %480 = vmatprep.subr.mxu0 0.0
        %481 = vmatpush1.msra.mxu0 0.0
        %482 = vmatprep.subr.mxu0 0.0
        %483 = vmatpush1.msra.mxu0 0.0
        %484 = vmatprep.subr.mxu0 0.0
        %485 = vmatpush1.msra.mxu0 0.0
        %486 = vmatprep.subr.mxu0 0.0
        %487 = vmatpush1.msra.mxu0 0.0
        %488 = vmatprep.subr.mxu0 0.0
        %489 = vmatpush1.msra.mxu0 0.0
        %490 = vmatprep.subr.mxu0 0.0
        %491 = vmatpush1.msra.mxu0 0.0
        %492 = vmatprep.subr.mxu0 0.0
        %493 = vmatpush1.msra.mxu0 0.0
        %494 = vmatprep.subr.mxu0 0.0
        %495 = vmatpush1.msra.mxu0 0.0
        %496 = vmatprep.subr.mxu0 0.0
        %497 = vmatpush1.msra.mxu0 0.0
        %498 = vmatprep.subr.mxu0 0.0
        %499 = vmatpush1.msra.mxu0 0.0
        %500 = vmatprep.subr.mxu0 0.0
        %501 = vmatpush1.msra.mxu0 0.0
        %502 = vmatprep.subr.mxu0 0.0
        %503 = vmatpush1.msra.mxu0 0.0
        %504 = vmatprep.subr.mxu0 0.0
        %505 = vmatpush1.msra.mxu0 0.0
        %506 = vmatprep.subr.mxu0 0.0
        %507 = vmatpush1.msra.mxu0 0.0
        %508 = vmatprep.subr.mxu0 0.0
        %509 = vmatpush1.msra.mxu0 0.0
        %510 = vmatprep.subr.mxu0 0.0
        %511 = vmatpush1.msra.mxu0 0.0
        %512 = vmatprep.mubr.f32.mxu0 0.0
        %513 = vmatmul.mubr.f32.gmra.mrb[0].mxu0 %v446
        %v514 = vpop.f32.mrb[0].mxu0
        %v515 = vadd.f32 0.0, %v514
        %v516 = vpop.f32.mrb[0].mxu0
        %v517 = vadd.f32 0.0, %v516
        %518 = vdwg.mxu0
        %519 = vmatprep.subr.mxu0 %v439
        %520 = vmatpush1.msra.mxu0 %v438
        %521 = vmatprep.subr.mxu0 0.0
        %522 = vmatpush1.msra.mxu0 0.0
        %523 = vmatprep.subr.mxu0 0.0
        %524 = vmatpush1.msra.mxu0 0.0
        %525 = vmatprep.subr.mxu0 0.0
        %526 = vmatpush1.msra.mxu0 0.0
        %527 = vmatprep.subr.mxu0 0.0
        %528 = vmatpush1.msra.mxu0 0.0
        %529 = vmatprep.subr.mxu0 0.0
        %530 = vmatpush1.msra.mxu0 0.0
        %531 = vmatprep.subr.mxu0 0.0
        %532 = vmatpush1.msra.mxu0 0.0
        %533 = vmatprep.subr.mxu0 0.0
        %534 = vmatpush1.msra.mxu0 0.0
        %535 = vmatprep.subr.mxu0 0.0
        %536 = vmatpush1.msra.mxu0 0.0
        %537 = vmatprep.subr.mxu0 0.0
        %538 = vmatpush1.msra.mxu0 0.0
        %539 = vmatprep.subr.mxu0 0.0
        %540 = vmatpush1.msra.mxu0 0.0
        %541 = vmatprep.subr.mxu0 0.0
        %542 = vmatpush1.msra.mxu0 0.0
        %543 = vmatprep.subr.mxu0 0.0
        %544 = vmatpush1.msra.mxu0 0.0
        %545 = vmatprep.subr.mxu0 0.0
        %546 = vmatpush1.msra.mxu0 0.0
        %547 = vmatprep.subr.mxu0 0.0
        %548 = vmatpush1.msra.mxu0 0.0
        %549 = vmatprep.subr.mxu0 0.0
        %550 = vmatpush1.msra.mxu0 0.0
        %551 = vmatprep.subr.mxu0 0.0
        %552 = vmatpush1.msra.mxu0 0.0
        %553 = vmatprep.subr.mxu0 0.0
        %554 = vmatpush1.msra.mxu0 0.0
        %555 = vmatprep.subr.mxu0 0.0
        %556 = vmatpush1.msra.mxu0 0.0
        %557 = vmatprep.subr.mxu0 0.0
        %558 = vmatpush1.msra.mxu0 0.0
        %559 = vmatprep.subr.mxu0 0.0
        %560 = vmatpush1.msra.mxu0 0.0
        %561 = vmatprep.subr.mxu0 0.0
        %562 = vmatpush1.msra.mxu0 0.0
        %563 = vmatprep.subr.mxu0 0.0
        %564 = vmatpush1.msra.mxu0 0.0
        %565 = vmatprep.subr.mxu0 0.0
        %566 = vmatpush1.msra.mxu0 0.0
        %567 = vmatprep.subr.mxu0 0.0
        %568 = vmatpush1.msra.mxu0 0.0
        %569 = vmatprep.subr.mxu0 0.0
        %570 = vmatpush1.msra.mxu0 0.0
        %571 = vmatprep.subr.mxu0 0.0
        %572 = vmatpush1.msra.mxu0 0.0
        %573 = vmatprep.subr.mxu0 0.0
        %574 = vmatpush1.msra.mxu0 0.0
        %575 = vmatprep.subr.mxu0 0.0
        %576 = vmatpush1.msra.mxu0 0.0
        %577 = vmatprep.subr.mxu0 0.0
        %578 = vmatpush1.msra.mxu0 0.0
        %579 = vmatprep.subr.mxu0 0.0
        %580 = vmatpush1.msra.mxu0 0.0
        %581 = vmatprep.subr.mxu0 0.0
        %582 = vmatpush1.msra.mxu0 0.0
        %583 = vmatprep.mubr.f32.mxu0 0.0
        %584 = vmatmul.mubr.f32.gmra.mrb[0].mxu0 %v446
        %v585 = vpop.f32.mrb[0].mxu0
        %v586 = vadd.f32 0.0, %v585
        %v587 = vpop.f32.mrb[0].mxu0
        %v588 = vadd.f32 0.0, %v587
        %589 = vdwg.mxu0
        %590 = vmatprep.subr.mxu0 %v441
        %591 = vmatpush1.msra.mxu0 %v440
        %592 = vmatprep.subr.mxu0 0.0
        %593 = vmatpush1.msra.mxu0 0.0
        %594 = vmatprep.subr.mxu0 0.0
        %595 = vmatpush1.msra.mxu0 0.0
        %596 = vmatprep.subr.mxu0 0.0
        %597 = vmatpush1.msra.mxu0 0.0
        %598 = vmatprep.subr.mxu0 0.0
        %599 = vmatpush1.msra.mxu0 0.0
        %600 = vmatprep.subr.mxu0 0.0
        %601 = vmatpush1.msra.mxu0 0.0
        %602 = vmatprep.subr.mxu0 0.0
        %603 = vmatpush1.msra.mxu0 0.0
        %604 = vmatprep.subr.mxu0 0.0
        %605 = vmatpush1.msra.mxu0 0.0
        %606 = vmatprep.subr.mxu0 0.0
        %607 = vmatpush1.msra.mxu0 0.0
        %608 = vmatprep.subr.mxu0 0.0
        %609 = vmatpush1.msra.mxu0 0.0
        %610 = vmatprep.subr.mxu0 0.0
        %611 = vmatpush1.msra.mxu0 0.0
        %612 = vmatprep.subr.mxu0 0.0
        %613 = vmatpush1.msra.mxu0 0.0
        %614 = vmatprep.subr.mxu0 0.0
        %615 = vmatpush1.msra.mxu0 0.0
        %616 = vmatprep.subr.mxu0 0.0
        %617 = vmatpush1.msra.mxu0 0.0
        %618 = vmatprep.subr.mxu0 0.0
        %619 = vmatpush1.msra.mxu0 0.0
        %620 = vmatprep.subr.mxu0 0.0
        %621 = vmatpush1.msra.mxu0 0.0
        %622 = vmatprep.subr.mxu0 0.0
        %623 = vmatpush1.msra.mxu0 0.0
        %624 = vmatprep.subr.mxu0 0.0
        %625 = vmatpush1.msra.mxu0 0.0
        %626 = vmatprep.subr.mxu0 0.0
        %627 = vmatpush1.msra.mxu0 0.0
        %628 = vmatprep.subr.mxu0 0.0
        %629 = vmatpush1.msra.mxu0 0.0
        %630 = vmatprep.subr.mxu0 0.0
        %631 = vmatpush1.msra.mxu0 0.0
        %632 = vmatprep.subr.mxu0 0.0
        %633 = vmatpush1.msra.mxu0 0.0
        %634 = vmatprep.subr.mxu0 0.0
        %635 = vmatpush1.msra.mxu0 0.0
        %636 = vmatprep.subr.mxu0 0.0
        %637 = vmatpush1.msra.mxu0 0.0
        %638 = vmatprep.subr.mxu0 0.0
        %639 = vmatpush1.msra.mxu0 0.0
        %640 = vmatprep.subr.mxu0 0.0
        %641 = vmatpush1.msra.mxu0 0.0
        %642 = vmatprep.subr.mxu0 0.0
        %643 = vmatpush1.msra.mxu0 0.0
        %644 = vmatprep.subr.mxu0 0.0
        %645 = vmatpush1.msra.mxu0 0.0
        %646 = vmatprep.subr.mxu0 0.0
        %647 = vmatpush1.msra.mxu0 0.0
        %648 = vmatprep.subr.mxu0 0.0
        %649 = vmatpush1.msra.mxu0 0.0
        %650 = vmatprep.subr.mxu0 0.0
        %651 = vmatpush1.msra.mxu0 0.0
        %652 = vmatprep.subr.mxu0 0.0
        %653 = vmatpush1.msra.mxu0 0.0
        %654 = vmatprep.mubr.f32.mxu0 0.0
        %655 = vmatmul.mubr.f32.gmra.mrb[0].mxu0 %v446
        %v656 = vpop.f32.mrb[0].mxu0
        %v657 = vadd.f32 0.0, %v656
        %v658 = vpop.f32.mrb[0].mxu0
        %v659 = vadd.f32 0.0, %v658
        %660 = vdwg.mxu0
        %661 = vmatprep.subr.mxu0 %v443
        %662 = vmatpush1.msra.mxu0 %v442
        %663 = vmatprep.subr.mxu0 0.0
        %664 = vmatpush1.msra.mxu0 0.0
        %665 = vmatprep.subr.mxu0 0.0
        %666 = vmatpush1.msra.mxu0 0.0
        %667 = vmatprep.subr.mxu0 0.0
        %668 = vmatpush1.msra.mxu0 0.0
        %669 = vmatprep.subr.mxu0 0.0
        %670 = vmatpush1.msra.mxu0 0.0
        %671 = vmatprep.subr.mxu0 0.0
        %672 = vmatpush1.msra.mxu0 0.0
        %673 = vmatprep.subr.mxu0 0.0
        %674 = vmatpush1.msra.mxu0 0.0
        %675 = vmatprep.subr.mxu0 0.0
        %676 = vmatpush1.msra.mxu0 0.0
        %677 = vmatprep.subr.mxu0 0.0
        %678 = vmatpush1.msra.mxu0 0.0
        %679 = vmatprep.subr.mxu0 0.0
        %680 = vmatpush1.msra.mxu0 0.0
        %681 = vmatprep.subr.mxu0 0.0
        %682 = vmatpush1.msra.mxu0 0.0
        %683 = vmatprep.subr.mxu0 0.0
        %684 = vmatpush1.msra.mxu0 0.0
        %685 = vmatprep.subr.mxu0 0.0
        %686 = vmatpush1.msra.mxu0 0.0
        %687 = vmatprep.subr.mxu0 0.0
        %688 = vmatpush1.msra.mxu0 0.0
        %689 = vmatprep.subr.mxu0 0.0
        %690 = vmatpush1.msra.mxu0 0.0
        %691 = vmatprep.subr.mxu0 0.0
        %692 = vmatpush1.msra.mxu0 0.0
        %693 = vmatprep.subr.mxu0 0.0
        %694 = vmatpush1.msra.mxu0 0.0
        %695 = vmatprep.subr.mxu0 0.0
        %696 = vmatpush1.msra.mxu0 0.0
        %697 = vmatprep.subr.mxu0 0.0
        %698 = vmatpush1.msra.mxu0 0.0
        %699 = vmatprep.subr.mxu0 0.0
        %700 = vmatpush1.msra.mxu0 0.0
        %701 = vmatprep.subr.mxu0 0.0
        %702 = vmatpush1.msra.mxu0 0.0
        %703 = vmatprep.subr.mxu0 0.0
        %704 = vmatpush1.msra.mxu0 0.0
        %705 = vmatprep.subr.mxu0 0.0
        %706 = vmatpush1.msra.mxu0 0.0
        %707 = vmatprep.subr.mxu0 0.0
        %708 = vmatpush1.msra.mxu0 0.0
        %709 = vmatprep.subr.mxu0 0.0
        %710 = vmatpush1.msra.mxu0 0.0
        %711 = vmatprep.subr.mxu0 0.0
        %712 = vmatpush1.msra.mxu0 0.0
        %713 = vmatprep.subr.mxu0 0.0
        %714 = vmatpush1.msra.mxu0 0.0
        %715 = vmatprep.subr.mxu0 0.0
        %716 = vmatpush1.msra.mxu0 0.0
        %717 = vmatprep.subr.mxu0 0.0
        %718 = vmatpush1.msra.mxu0 0.0
        %719 = vmatprep.subr.mxu0 0.0
        %720 = vmatpush1.msra.mxu0 0.0
        %721 = vmatprep.subr.mxu0 0.0
        %722 = vmatpush1.msra.mxu0 0.0
        %723 = vmatprep.subr.mxu0 0.0
        %724 = vmatpush1.msra.mxu0 0.0
        %725 = vmatprep.mubr.f32.mxu0 0.0
        %726 = vmatmul.mubr.f32.gmra.mrb[0].mxu0 %v446
        %v727 = vpop.f32.mrb[0].mxu0
        %v728 = vadd.f32 0.0, %v727
        %v729 = vpop.f32.mrb[0].mxu0
        %v730 = vadd.f32 0.0, %v729
        %731 = vdwg.mxu0
        %v732 = vcombine.low %v515, %v586
        %v734 = vunpack.c.l.s4 1983009808
        %v735 = vunpack.c.0.s8 %v734
        %v736 = vlaneseq
        %v737 = vshrl.u32 %v736, 7
        %v738 = vsub.s32 %v735, %v737
        %v739 = vrot.slane %v732, %v738
        %v740 = vcombine.low %v517, %v588
        %v742 = vunpack.c.l.s4 1983009808
        %v743 = vunpack.c.0.s8 %v742
        %v744 = vlaneseq
        %v745 = vshrl.u32 %v744, 7
        %v746 = vsub.s32 %v743, %v745
        %v747 = vrot.slane %v740, %v746
        %v748 = vcombine.low %v657, %v728
        %v750 = vunpack.c.l.s4 1983009808
        %v751 = vunpack.c.0.s8 %v750
        %v752 = vlaneseq
        %v753 = vshrl.u32 %v752, 7
        %v754 = vsub.s32 %v751, %v753
        %v755 = vrot.slane %v748, %v754
        %v756 = vcombine.low %v659, %v730
        %v758 = vunpack.c.l.s4 1983009808
        %v759 = vunpack.c.0.s8 %v758
        %v760 = vlaneseq
        %v761 = vshrl.u32 %v760, 7
        %v762 = vsub.s32 %v759, %v761
        %v763 = vrot.slane %v756, %v762
        %v764 = vcombine.low %v739, %v747
        %v765 = vcombine.high %v739, %v747
        %v767 = vunpack.c.l.s4 1934713408
        %v768 = vunpack.c.0.s8 %v767
        %v769 = vlaneseq
        %v770 = vshrl.u32 %v769, 7
        %v771 = vsub.s32 %v768, %v770
        %v772 = vrot.slane %v764, %v771
        %v774 = vunpack.c.l.s4 1934713408
        %v775 = vunpack.c.0.s8 %v774
        %v776 = vlaneseq
        %v777 = vshrl.u32 %v776, 7
        %v778 = vsub.s32 %v775, %v777
        %v779 = vrot.slane %v765, %v778
        %v780 = vcombine.low %v755, %v763
        %v781 = vcombine.high %v755, %v763
        %v783 = vunpack.c.l.s4 1934713408
        %v784 = vunpack.c.0.s8 %v783
        %v785 = vlaneseq
        %v786 = vshrl.u32 %v785, 7
        %v787 = vsub.s32 %v784, %v786
        %v788 = vrot.slane %v780, %v787
        %v790 = vunpack.c.l.s4 1934713408
        %v791 = vunpack.c.0.s8 %v790
        %v792 = vlaneseq
        %v793 = vshrl.u32 %v792, 7
        %v794 = vsub.s32 %v791, %v793
        %v795 = vrot.slane %v781, %v794
        %v796 = vcombine.low %v772, %v788
        %v797 = vcombine.high %v772, %v788
        %v798 = vcombine.low %v779, %v795
        %v799 = vld [vmem:[%s367] sm:$0xff]
        %s800 = scalar_lea.vmem %s367, 8
        %v801 = vld [vmem:[%s800] sm:$0xff]
        %s802 = scalar_lea.vmem %s367, 16
        %v803 = vld [vmem:[%s802] sm:$0xff]
        %805 = vset.pattern.permute.xlu0 0
        %806 = vperm.xlu0 %805, %v369
        %v807 = vpop.permute.xlu0 %806
        %v809 = vsub.f32 %v796, %v807
        %s810 = smul.u32 %s33, 4
        %s811 = smul.u32 %s810, 128
        %s812 = sld [smem:[#allocation3 + %s811]]
        %v813 = vstv %s812
        %v814 = vmul.f32 %v813, %v799
        %v815 = vadd.f32 %v809, %v814
        %s816 = sadd.s32 1, %s810
        %s817 = smul.u32 %s816, 128
        %s818 = sld [smem:[#allocation3 + %s817]]
        %v819 = vstv %s818
        %v820 = vmul.f32 %v819, %v801
        %v821 = vadd.f32 %v815, %v820
        %s822 = sadd.s32 2, %s810
        %s823 = smul.u32 %s822, 128
        %s824 = sld [smem:[#allocation3 + %s823]]
        %v825 = vstv %s824
        %v826 = vmul.f32 %v825, %v803
        %v827 = vadd.f32 %v821, %v826
        %v828 = vmul.f32 %v827, %v827
        %829 = vset.pattern.permute.xlu0 1
        %830 = vperm.xlu0 %829, %v369
        %v831 = vpop.permute.xlu0 %830
        %v833 = vsub.f32 %v797, %v831
        %s834 = sadd.s32 %s811, 1
        %s835 = sld [smem:[#allocation3 + %s834]]
        %v836 = vstv %s835
        %v837 = vmul.f32 %v836, %v799
        %v838 = vadd.f32 %v833, %v837
        %s839 = sadd.s32 %s817, 1
        %s840 = sld [smem:[#allocation3 + %s839]]
        %v841 = vstv %s840
        %v842 = vmul.f32 %v841, %v801
        %v843 = vadd.f32 %v838, %v842
        %s844 = sadd.s32 %s823, 1
        %s845 = sld [smem:[#allocation3 + %s844]]
        %v846 = vstv %s845
        %v847 = vmul.f32 %v846, %v803
        %v848 = vadd.f32 %v843, %v847
        %v849 = vmul.f32 %v848, %v848
        %v850 = vadd.f32 %v828, %v849
        %851 = vset.pattern.permute.xlu0 2
        %852 = vperm.xlu0 %851, %v369
        %v853 = vpop.permute.xlu0 %852
        %v855 = vsub.f32 %v798, %v853
        %s856 = sadd.s32 %s811, 2
        %s857 = sld [smem:[#allocation3 + %s856]]
        %v858 = vstv %s857
        %v859 = vmul.f32 %v858, %v799
        %v860 = vadd.f32 %v855, %v859
        %s861 = sadd.s32 %s817, 2
        %s862 = sld [smem:[#allocation3 + %s861]]
        %v863 = vstv %s862
        %v864 = vmul.f32 %v863, %v801
        %v865 = vadd.f32 %v860, %v864
        %s866 = sadd.s32 %s823, 2
        %s867 = sld [smem:[#allocation3 + %s866]]
        %v868 = vstv %s867
        %v869 = vmul.f32 %v868, %v803
        %v870 = vadd.f32 %v865, %v869
        %v871 = vmul.f32 %v870, %v870
        %v872 = vadd.f32 %v850, %v871
        %v873 = vrsqrt.pop %v872
        %v874 = vmul.f32 %v872, %v873
        %vm875 = vcmp.eq.f32.partialorder %v872, inf
        %v876 = vsel %vm875, %v872, %v874
        %vm877 = vcmp.eq.f32.partialorder %v872, 0.0
        %v878 = vand.u32 %v872, 2147483648
        %v879 = vsel %vm877, %v878, %v876
        %v880 = vmul.f32 %v879, %v370
        %881 = vst [vmem:[%s341] sm:$0xff] %v880
        %s882 = sand.u32 %s189, 1
        %s883 = scalar_lea.sflag [#allocation6], %s882
        %s884 = sand.u32 %s189, 1
        %s885 = smul.addr %s884, 8
        %s886 = scalar_lea.vmem [#allocation7], %s885
        // Predicated region
        $region45: #{tpu_custom_call.1} parent=39 // pred_check
          %p887 = pneg %p199
        $region46: #{tpu_custom_call.1} parent=39 // pred_check_branch
          %889 = sbr.rel (%p887) target = $region48
        $region47: #{tpu_custom_call.1} parent=39 // pred_region
          %s891 = ssub.s32 128, 128
          %892 = vsyncadd %s883, %s891
          %s893 = sadd.s32 %s34, %s33
          %s894 = smul.addr %s893, 128
          %s895 = scalar_lea.hbm %s6, %s894
          %s897 = sshll.u32 %s886, 4
          %s898 = int_to_ptr.vmem [resolvable:$true] %s897
          %900 = dma.vmem_to_hbm [thread:$0]  %s898, 128, %s895, %s883
        $region48: #{tpu_custom_call.1} parent=39 // pred_fallthru
          _
      $region40: #{tpu_custom_call.1} parent=5 // pred_fallthru
        _
      %p901 = scmp.le.s32.totalorder 2, %s24
      // Predicated region
      $region49: #{tpu_custom_call.1} parent=5 // pred_check
        %p902 = pneg %p901
      $region50: #{tpu_custom_call.1} parent=5 // pred_check_branch
        %904 = sbr.rel (%p902) target = $region52
      $region51: #{tpu_custom_call.1} parent=5 // pred_region
        %s905 = ssub.s32 %s24, 2
        // Predicated region
        $region53: #{tpu_custom_call.1} parent=51 // pred_check
          %p906 = pneg %p205
        $region54: #{tpu_custom_call.1} parent=51 // pred_check_branch
          %908 = sbr.rel (%p906) target = $region56
        $region55: #{tpu_custom_call.1} parent=51 // pred_region
          %s909 = sand.u32 %s190, 1
          %s910 = scalar_lea.sflag [#allocation6], %s909
          %s911 = sand.u32 %s190, 1
          %s912 = smul.addr %s911, 8
          %s913 = scalar_lea.vmem [#allocation7], %s912
          %914 = dma.done %s910, 128
        $region56: #{tpu_custom_call.1} parent=51 // pred_fallthru
          _
      $region52: #{tpu_custom_call.1} parent=5 // pred_fallthru
        _
    $region6: #{tpu_custom_call.1} parent=1 // loop_footer
      %s28 = sadd.s32 1, %s24
    $region7: #{tpu_custom_call.1} parent=1 // loop_footer_branch
      %23 = sbr.rel target = $region3
    $region8: #{tpu_custom_call.1} parent=1 // loop_exit
      _
    %915 = vsyncpa [#allocation5], 1
    %s916 = scalar_lea.sflag [#allocation5], 1
    %917 = vsyncpa %s916, 1
    %918 = vsyncpa [#allocation6], 1
    %s919 = scalar_lea.sflag [#allocation6], 1
    %920 = vsyncpa %s919, 1

</llo_original>
